<compile_context>
chip_gen: v7x
topology: tpu7x:2x2x1
jax: 0.10.0
libtpu: 0.0.40
codegen_flags: <defaults>
</compile_context>

<pallas_src>
import jax
import jax.numpy as jnp
from jax.experimental import pallas as pl
from jax.experimental.pallas import tpu as pltpu


def _round_up(x, m):
    return ((x + m - 1) // m) * m


def _semantic_query_kernel(idx_ref, emb_ref, w1_ref, b1_ref, w2_ref, b2_ref,
                           out_ref):
    # idx_ref : (TN, 1)     int32      VMEM  -- class index per output row
    # emb_ref : (C_pad, D)  bf16/f32   VMEM  -- zero-padded embedding table
    # w1_ref  : (D, D)      bf16/f32   VMEM  -- Linear1 weight, stored (in, out)
    # b1_ref  : (1, D)      f32        VMEM
    # w2_ref  : (D, D)      bf16/f32   VMEM  -- Linear2 weight, stored (in, out)
    # b2_ref  : (1, D)      f32        VMEM
    # out_ref : (TN, D)     f32        VMEM
    tile_n = idx_ref.shape[0]
    c_pad = emb_ref.shape[0]
    cd = emb_ref.dtype                                    # MXU operand dtype

    # --- Embedding gather as a one-hot MXU matmul (no serial row copies). ---
    idx = idx_ref[...]                                    # (TN, 1) int32
    classes = jax.lax.broadcasted_iota(jnp.int32, (tile_n, c_pad), 1)
    onehot = (idx == classes).astype(cd)                  # (TN, C_pad)
    # Exactly one 1.0 per row -> x holds the (bf16-rounded) embedding rows.
    x = jnp.dot(onehot, emb_ref[...], preferred_element_type=jnp.float32)

    # --- MLP: Linear -> ReLU -> Linear (f32 accumulation, f32 epilogue). ---
    h = jnp.dot(x.astype(cd), w1_ref[...],
                preferred_element_type=jnp.float32) + b1_ref[...]
    h = jnp.maximum(h, 0.0)
    y = jnp.dot(h.astype(cd), w2_ref[...],
                preferred_element_type=jnp.float32) + b2_ref[...]

    out_ref[...] = y.astype(out_ref.dtype)


def semantic_query_generator(class_indices, params, *, tile_n=None,
                             matmul_dtype=jnp.bfloat16):
    """JAX wrapper matching SemanticQueryGenerator.forward.

    Args:
      class_indices: int array (num_queries,) or (num_queries, B)
      params: dict with 'emb' (C, D), 'w1' (D, D), 'b1' (D,), 'w2' (D, D),
              'b2' (D,). Linear weights are stored as (in_features, out_features),
              i.e. PyTorch `weight.T` (a checkpoint loader must transpose).
      tile_n: optional row-tile override (rounded up to a multiple of 8).
      matmul_dtype: dtype of MXU operands (bf16 default; f32 for closer parity).
    Returns:
      (num_queries, B, D) float32
    """
    if class_indices.ndim == 1:
        class_indices = class_indices[:, None]            # (num_queries, 1)
    num_queries, batch = class_indices.shape

    emb = params["emb"]
    num_classes, embed_dims = emb.shape

    # Pad the class axis to a multiple of 128 so the one-hot contraction is a
    # clean MXU pass; padded rows are zero and never selected (indices clamped).
    c_pad = max(_round_up(num_classes, 128), 128)
    emb_p = jnp.zeros((c_pad, embed_dims), matmul_dtype)
    emb_p = emb_p.at[:num_classes].set(emb.astype(matmul_dtype))

    w1 = params["w1"].astype(matmul_dtype)
    w2 = params["w2"].astype(matmul_dtype)
    b1 = params["b1"].astype(jnp.float32).reshape(1, -1)
    b2 = params["b2"].astype(jnp.float32).reshape(1, -1)

    n_flat = num_queries * batch
    if tile_n is None:
        if n_flat < 512:
            tile_n = _round_up(max(n_flat, 8), 8)          # single lane-dense step
        else:
            # >= 2 balanced steps (spans both v7x TCs), capped at 512 rows.
            tile_n = min(_round_up(pl.cdiv(n_flat, 2), 8), 512)
    else:
        tile_n = _round_up(int(tile_n), 8)
    padded_n = _round_up(n_flat, tile_n)

    idx_flat = jnp.clip(class_indices.reshape(-1).astype(jnp.int32),
                        0, num_classes - 1)
    idx_padded = jnp.pad(idx_flat, (0, padded_n - n_flat)).reshape(padded_n, 1)

    grid = (padded_n // tile_n,)
    out = pl.pallas_call(
        _semantic_query_kernel,
        out_shape=jax.ShapeDtypeStruct((padded_n, embed_dims), jnp.float32),
        grid_spec=pltpu.PrefetchScalarGridSpec(
            num_scalar_prefetch=0,
            grid=grid,
            in_specs=[
                pl.BlockSpec((tile_n, 1), lambda i: (i, 0)),                 # idx
                pl.BlockSpec((c_pad, embed_dims), lambda i: (0, 0)),         # emb
                pl.BlockSpec((embed_dims, embed_dims), lambda i: (0, 0)),    # w1
                pl.BlockSpec((1, embed_dims), lambda i: (0, 0)),             # b1
                pl.BlockSpec((embed_dims, embed_dims), lambda i: (0, 0)),    # w2
                pl.BlockSpec((1, embed_dims), lambda i: (0, 0)),             # b2
            ],
            out_specs=pl.BlockSpec((tile_n, embed_dims), lambda i: (i, 0)),
        ),
        compiler_params=pltpu.CompilerParams(
            dimension_semantics=("parallel",),             # shards across v7x's 2 TCs
        ),
    )(idx_padded, emb_p, w1, b1, w2, b2)

    return out[:n_flat].reshape(num_queries, batch, embed_dims)


def _init_params(key, num_classes, embed_dims):
    """Deterministic synthetic parameters (matching nn.Embedding / nn.Linear shapes)."""
    k_emb, k_w1, k_b1, k_w2, k_b2 = jax.random.split(key, 5)
    scale = 1.0 / jnp.sqrt(embed_dims)
    return {
        "emb": jax.random.normal(k_emb, (num_classes, embed_dims), jnp.float32),
        # Linear weights stored as (in, out)  (i.e. PyTorch weight.T)
        "w1": jax.random.uniform(k_w1, (embed_dims, embed_dims), jnp.float32, -scale, scale),
        "b1": jax.random.uniform(k_b1, (embed_dims,), jnp.float32, -scale, scale),
        "w2": jax.random.uniform(k_w2, (embed_dims, embed_dims), jnp.float32, -scale, scale),
        "b2": jax.random.uniform(k_b2, (embed_dims,), jnp.float32, -scale, scale),
    }


if __name__ == "__main__":
    num_classes = 10
    embed_dims = 256     # module default
    num_queries = 20
    batch = 2

    key = jax.random.PRNGKey(0)
    k_params, k_idx = jax.random.split(key)
    params = _init_params(k_params, num_classes, embed_dims)
    class_indices = jax.random.randint(k_idx, (num_queries, batch), 0, num_classes, jnp.int32)

    sem = semantic_query_generator(class_indices, params)
    sem = jax.block_until_ready(sem)
    assert sem.shape == (num_queries, batch, embed_dims)

    # Reference with the same bf16 matmul-operand casting (tight check).
    cd = jnp.bfloat16
    x_ref = params["emb"][class_indices]                                   # (nq, B, D)
    h_ref = jnp.maximum(
        jnp.dot(x_ref.astype(cd), params["w1"].astype(cd),
                preferred_element_type=jnp.float32) + params["b1"], 0.0)
    y_ref = jnp.dot(h_ref.astype(cd), params["w2"].astype(cd),
                    preferred_element_type=jnp.float32) + params["b2"]
    assert jnp.allclose(sem, y_ref, atol=1e-2, rtol=1e-2)

    # Full-f32 PyTorch-style reference (loose check, bounds the bf16 rounding).
    h32 = jnp.maximum(x_ref @ params["w1"] + params["b1"], 0.0)
    y32 = h32 @ params["w2"] + params["b2"]
    assert jnp.allclose(sem, y32, atol=5e-2, rtol=5e-2)

    print("KERNEL_OK")
</pallas_src>

<mosaic_0001>
module attributes {stable_mosaic.version = 11 : i64} {
  func.func @_semantic_query_kernel(%arg0: i32, %arg1: memref<40x1xi32, #tpu.memory_space<vmem>>, %arg2: memref<128x256xbf16, #tpu.memory_space<vmem>>, %arg3: memref<256x256xbf16, #tpu.memory_space<vmem>>, %arg4: memref<1x256xf32, #tpu.memory_space<vmem>>, %arg5: memref<256x256xbf16, #tpu.memory_space<vmem>>, %arg6: memref<1x256xf32, #tpu.memory_space<vmem>>, %arg7: memref<40x256xf32, #tpu.memory_space<vmem>>) attributes {dimension_semantics = [#tpu.dimension_semantics<parallel>], iteration_bounds = array<i64: 1>, scalar_prefetch = 0 : i64, scratch_operands = 0 : i64, tpu.core_type = #tpu.core_type<tc>, window_params = [{transform_indices = @transform_0, window_bounds = array<i64: 40, 1>}, {pipeline_mode = #tpu.pipeline_mode<synchronous>, transform_indices = @transform_1, window_bounds = array<i64: 128, 256>}, {pipeline_mode = #tpu.pipeline_mode<synchronous>, transform_indices = @transform_2, window_bounds = array<i64: 256, 256>}, {pipeline_mode = #tpu.pipeline_mode<synchronous>, transform_indices = @transform_3, window_bounds = array<i64: 1, 256>}, {pipeline_mode = #tpu.pipeline_mode<synchronous>, transform_indices = @transform_4, window_bounds = array<i64: 256, 256>}, {pipeline_mode = #tpu.pipeline_mode<synchronous>, transform_indices = @transform_5, window_bounds = array<i64: 1, 256>}, {transform_indices = @transform_6, window_bounds = array<i64: 40, 256>}]} {
    %c0 = arith.constant 0 : index
    %c0_0 = arith.constant 0 : index
    %0 = vector.load %arg1[%c0, %c0_0] : memref<40x1xi32, #tpu.memory_space<vmem>>, vector<40x1xi32>
    %1 = tpu.iota {dimensions = array<i32: 1>} : vector<40x128xi32>
    %2 = vector.broadcast %0 : vector<40x1xi32> to vector<40x128xi32>
    %3 = arith.cmpi eq, %2, %1 : vector<40x128xi32>
    %4 = arith.extui %3 : vector<40x128xi1> to vector<40x128xi32>
    %5 = arith.sitofp %4 : vector<40x128xi32> to vector<40x128xf32>
    %6 = arith.truncf %5 : vector<40x128xf32> to vector<40x128xbf16>
    %c0_1 = arith.constant 0 : index
    %c0_2 = arith.constant 0 : index
    %7 = vector.load %arg2[%c0_1, %c0_2] : memref<128x256xbf16, #tpu.memory_space<vmem>>, vector<128x256xbf16>
    %cst = arith.constant dense<0.000000e+00> : vector<40x256xf32>
    %8 = tpu.matmul %6, %7, %cst {dimension_numbers = #tpu.dot_dimension_numbers<[1], [0], [0], [1], [0, 0, 1, 1], [], []>} : vector<40x128xbf16>, vector<128x256xbf16>, vector<40x256xf32> -> vector<40x256xf32>
    %9 = arith.truncf %8 : vector<40x256xf32> to vector<40x256xbf16>
    %c0_3 = arith.constant 0 : index
    %c0_4 = arith.constant 0 : index
    %10 = vector.load %arg3[%c0_3, %c0_4] : memref<256x256xbf16, #tpu.memory_space<vmem>>, vector<256x256xbf16>
    %cst_5 = arith.constant dense<0.000000e+00> : vector<40x256xf32>
    %11 = tpu.matmul %9, %10, %cst_5 {dimension_numbers = #tpu.dot_dimension_numbers<[1], [0], [0], [1], [0, 0, 1, 1], [], []>} : vector<40x256xbf16>, vector<256x256xbf16>, vector<40x256xf32> -> vector<40x256xf32>
    %c0_6 = arith.constant 0 : index
    %c0_7 = arith.constant 0 : index
    %12 = vector.load %arg4[%c0_6, %c0_7] : memref<1x256xf32, #tpu.memory_space<vmem>>, vector<1x256xf32>
    %13 = vector.broadcast %12 : vector<1x256xf32> to vector<40x256xf32>
    %14 = arith.addf %11, %13 : vector<40x256xf32>
    %cst_8 = arith.constant 0.000000e+00 : f32
    %15 = vector.broadcast %cst_8 : f32 to vector<40x256xf32>
    %16 = arith.maximumf %14, %15 : vector<40x256xf32>
    %17 = arith.truncf %16 : vector<40x256xf32> to vector<40x256xbf16>
    %c0_9 = arith.constant 0 : index
    %c0_10 = arith.constant 0 : index
    %18 = vector.load %arg5[%c0_9, %c0_10] : memref<256x256xbf16, #tpu.memory_space<vmem>>, vector<256x256xbf16>
    %cst_11 = arith.constant dense<0.000000e+00> : vector<40x256xf32>
    %19 = tpu.matmul %17, %18, %cst_11 {dimension_numbers = #tpu.dot_dimension_numbers<[1], [0], [0], [1], [0, 0, 1, 1], [], []>} : vector<40x256xbf16>, vector<256x256xbf16>, vector<40x256xf32> -> vector<40x256xf32>
    %c0_12 = arith.constant 0 : index
    %c0_13 = arith.constant 0 : index
    %20 = vector.load %arg6[%c0_12, %c0_13] : memref<1x256xf32, #tpu.memory_space<vmem>>, vector<1x256xf32>
    %21 = vector.broadcast %20 : vector<1x256xf32> to vector<40x256xf32>
    %22 = arith.addf %19, %21 : vector<40x256xf32>
    %c0_14 = arith.constant 0 : index
    %c0_15 = arith.constant 0 : index
    %23 = vector.load %arg7[%c0_14, %c0_15] : memref<40x256xf32, #tpu.memory_space<vmem>>, vector<40x256xf32>
    tpu.vector_store %arg7[%c0_14, %c0_15], %22 {strides = array<i32>} : memref<40x256xf32, #tpu.memory_space<vmem>>, vector<40x256xf32>,
    return
  }
  func.func @transform_0(%arg0: i32) -> (i32, i32) {
    %c0_i32 = arith.constant 0 : i32
    %c0_i32_0 = arith.constant 0 : i32
    return %arg0, %c0_i32 : i32, i32
  }
  func.func @transform_1(%arg0: i32) -> (i32, i32) {
    %c0_i32 = arith.constant 0 : i32
    %c0_i32_0 = arith.constant 0 : i32
    %c0_i32_1 = arith.constant 0 : i32
    return %c0_i32, %c0_i32_0 : i32, i32
  }
  func.func @transform_2(%arg0: i32) -> (i32, i32) {
    %c0_i32 = arith.constant 0 : i32
    %c0_i32_0 = arith.constant 0 : i32
    %c0_i32_1 = arith.constant 0 : i32
    return %c0_i32, %c0_i32_0 : i32, i32
  }
  func.func @transform_3(%arg0: i32) -> (i32, i32) {
    %c0_i32 = arith.constant 0 : i32
    %c0_i32_0 = arith.constant 0 : i32
    %c0_i32_1 = arith.constant 0 : i32
    return %c0_i32, %c0_i32_0 : i32, i32
  }
  func.func @transform_4(%arg0: i32) -> (i32, i32) {
    %c0_i32 = arith.constant 0 : i32
    %c0_i32_0 = arith.constant 0 : i32
    %c0_i32_1 = arith.constant 0 : i32
    return %c0_i32, %c0_i32_0 : i32, i32
  }
  func.func @transform_5(%arg0: i32) -> (i32, i32) {
    %c0_i32 = arith.constant 0 : i32
    %c0_i32_0 = arith.constant 0 : i32
    %c0_i32_1 = arith.constant 0 : i32
    return %c0_i32, %c0_i32_0 : i32, i32
  }
  func.func @transform_6(%arg0: i32) -> (i32, i32) {
    %c0_i32 = arith.constant 0 : i32
    %c0_i32_0 = arith.constant 0 : i32
    return %arg0, %c0_i32 : i32, i32
  }
}

</mosaic_0001>

<llo_original>
// kernel: tpu_custom_call.1
$region0: #{tpu_custom_call.1}
  #allocation0 [shape = 'u32[]', space=smem, size = 0x4, offset = 0x4, fixed_abs, tag = 'smem constant byte address 0x4 - core index']
  #allocation1 [shape = 'u32[144,128]{1,0:T(1,128)}', space=vmem, size = 0x12000, scoped, tag = 'internal scratch']
  %s0 = inlined_call_operand.vmem [shape: s32[40,1], index: 0, kind: input, shape index: {}]
  %s1 = inlined_call_operand.hbm [shape: bf16[128,256], index: 1, kind: input, shape index: {}]
  %s2 = inlined_call_operand.hbm [shape: bf16[256,256], index: 2, kind: input, shape index: {}]
  %s3 = inlined_call_operand.vmem [shape: f32[1,256], index: 3, kind: input, shape index: {}]
  %s4 = inlined_call_operand.hbm [shape: bf16[256,256], index: 4, kind: input, shape index: {}]
  %s5 = inlined_call_operand.vmem [shape: f32[1,256], index: 5, kind: input, shape index: {}]
  %s6 = inlined_call_operand.hbm [shape: f32[40,256], index: 6, kind: output, shape index: {}]
  %s7 = sld [smem:[#allocation0]]
  $region46: #{tpu_custom_call.1} parent=0
    _
  %s9 = ssub.s32 1, %s7
  %s10 = scalar_select 0, %s9, %s7
  $region1: #{tpu_custom_call.1} parent=0
    #allocation2 [shape = 'u8[65536]{0}', space=vmem, size = 0x10000, scoped, tag = 'input window, operand 1, single buffered']
    #allocation3 [shape = 's32[1]{0}', space=sflag, size = 0x4, scoped, tag = 'scoped memory for tpu_custom_call.1']
    #allocation4 [shape = 's32[1]{0}', space=sflag, size = 0x4, scoped, tag = 'scoped memory for tpu_custom_call.1']
    #allocation5 [shape = 'u8[131072]{0}', space=vmem, size = 0x20000, scoped, tag = 'input window, operand 2, single buffered']
    #allocation6 [shape = 's32[1]{0}', space=sflag, size = 0x4, scoped, tag = 'scoped memory for tpu_custom_call.1']
    #allocation7 [shape = 'u8[131072]{0}', space=vmem, size = 0x20000, scoped, tag = 'input window, operand 4, single buffered']
    #allocation8 [shape = 'u8[40960]{0}', space=vmem, size = 0xa000, scoped, tag = 'output window, operand 0, single buffered']
    %11 = vsyncpa [#allocation3], 0
    %12 = vsyncpa [#allocation6], 0
    %13 = vsyncpa [#allocation4], 0
    // Predicated region
    $region2: #{tpu_custom_call.1} parent=1 // pred_check
      _
    $region3: #{tpu_custom_call.1} parent=1 // pred_check_branch
      %15 = sbr.rel (0) target = $region5
    $region4: #{tpu_custom_call.1} parent=1 // pred_region
      _
    $region5: #{tpu_custom_call.1} parent=1 // pred_fallthru
      _
    // Predicated region
    $region6: #{tpu_custom_call.1} parent=1 // pred_check
      _
    $region7: #{tpu_custom_call.1} parent=1 // pred_check_branch
      %17 = sbr.rel (0) target = $region9
    $region8: #{tpu_custom_call.1} parent=1 // pred_region
      %s19 = ssub.s32 2048, 2048
      %20 = vsyncadd [#allocation3], %s19
      %s21 = sshll.u32 [#allocation2], 4
      %s22 = int_to_ptr.vmem [resolvable:$true] %s21
      %27 = dma.hbm_to_vmem [thread:$0]  %s1, 2048, %s22, [#allocation3], 128, 128, 8
    $region9: #{tpu_custom_call.1} parent=1 // pred_fallthru
      _
    // Predicated region
    $region10: #{tpu_custom_call.1} parent=1 // pred_check
      _
    $region11: #{tpu_custom_call.1} parent=1 // pred_check_branch
      %29 = sbr.rel (0) target = $region13
    $region12: #{tpu_custom_call.1} parent=1 // pred_region
      %s31 = ssub.s32 4096, 4096
      %32 = vsyncadd [#allocation6], %s31
      %s33 = sshll.u32 [#allocation5], 4
      %s34 = int_to_ptr.vmem [resolvable:$true] %s33
      %39 = dma.hbm_to_vmem [thread:$0]  %s2, 4096, %s34, [#allocation6], 128, 128, 8
    $region13: #{tpu_custom_call.1} parent=1 // pred_fallthru
      _
    // Predicated region
    $region14: #{tpu_custom_call.1} parent=1 // pred_check
      _
    $region15: #{tpu_custom_call.1} parent=1 // pred_check_branch
      %41 = sbr.rel (0) target = $region17
    $region16: #{tpu_custom_call.1} parent=1 // pred_region
      _
    $region17: #{tpu_custom_call.1} parent=1 // pred_fallthru
      _
    // Predicated region
    $region18: #{tpu_custom_call.1} parent=1 // pred_check
      _
    $region19: #{tpu_custom_call.1} parent=1 // pred_check_branch
      %43 = sbr.rel (0) target = $region21
    $region20: #{tpu_custom_call.1} parent=1 // pred_region
      %s45 = ssub.s32 4096, 4096
      %46 = vsyncadd [#allocation6], %s45
      %s47 = sshll.u32 [#allocation7], 4
      %s48 = int_to_ptr.vmem [resolvable:$true] %s47
      %53 = dma.hbm_to_vmem [thread:$0]  %s4, 4096, %s48, [#allocation6], 128, 128, 8
    $region21: #{tpu_custom_call.1} parent=1 // pred_fallthru
      _
    // Predicated region
    $region22: #{tpu_custom_call.1} parent=1 // pred_check
      _
    $region23: #{tpu_custom_call.1} parent=1 // pred_check_branch
      %55 = sbr.rel (0) target = $region25
    $region24: #{tpu_custom_call.1} parent=1 // pred_region
      _
    $region25: #{tpu_custom_call.1} parent=1 // pred_fallthru
      _
    // Predicated region
    $region26: #{tpu_custom_call.1} parent=1 // pred_check
      _
    $region27: #{tpu_custom_call.1} parent=1 // pred_check_branch
      %57 = sbr.rel (0) target = $region29
    $region28: #{tpu_custom_call.1} parent=1 // pred_region
      %58 = dma.done [#allocation3], 2048
    $region29: #{tpu_custom_call.1} parent=1 // pred_fallthru
      _
    // Predicated region
    $region30: #{tpu_custom_call.1} parent=1 // pred_check
      _
    $region31: #{tpu_custom_call.1} parent=1 // pred_check_branch
      %60 = sbr.rel (0) target = $region33
    $region32: #{tpu_custom_call.1} parent=1 // pred_region
      %61 = dma.done [#allocation6], 4096
    $region33: #{tpu_custom_call.1} parent=1 // pred_fallthru
      _
    // Predicated region
    $region34: #{tpu_custom_call.1} parent=1 // pred_check
      _
    $region35: #{tpu_custom_call.1} parent=1 // pred_check_branch
      %63 = sbr.rel (0) target = $region37
    $region36: #{tpu_custom_call.1} parent=1 // pred_region
      %64 = dma.done [#allocation6], 4096
    $region37: #{tpu_custom_call.1} parent=1 // pred_fallthru
      _
    %v66 = vld [vmem:[%s0] sm:$0xff]
    %v67 = vld [vmem:[%s0 + $0x8] sm:$0xff]
    %v68 = vld [vmem:[%s0 + $0x10] sm:$0xff]
    %v69 = vld [vmem:[%s0 + $0x18] sm:$0xff]
    %v70 = vld [vmem:[%s0 + $0x20] sm:$0xff]
    %v71 = vlaneseq
    %v72 = vand.u32 %v71, 127
    %73 = vset.pattern.permute.xlu0 0
    %74 = vperm.xlu0 %73, %v66
    %v75 = vpop.permute.xlu0 %74
    %76 = vset.pattern.permute.xlu0 0
    %77 = vperm.xlu0 %76, %v67
    %v78 = vpop.permute.xlu0 %77
    %79 = vset.pattern.permute.xlu0 0
    %80 = vperm.xlu0 %79, %v68
    %v81 = vpop.permute.xlu0 %80
    %82 = vset.pattern.permute.xlu0 0
    %83 = vperm.xlu0 %82, %v69
    %v84 = vpop.permute.xlu0 %83
    %85 = vset.pattern.permute.xlu0 0
    %86 = vperm.xlu0 %85, %v70
    %v87 = vpop.permute.xlu0 %86
    %vm88 = vcmp.eq.s32.totalorder %v75, %v72
    %vm89 = vcmp.eq.s32.totalorder %v78, %v72
    %vm90 = vcmp.eq.s32.totalorder %v81, %v72
    %vm91 = vcmp.eq.s32.totalorder %v84, %v72
    %vm92 = vcmp.eq.s32.totalorder %v87, %v72
    %v93 = vsel %vm88, 1, 0
    %v94 = vsel %vm89, 1, 0
    %v95 = vsel %vm90, 1, 0
    %v96 = vsel %vm91, 1, 0
    %v97 = vsel %vm92, 1, 0
    %v98 = vcvt.s32.f32 %v93
    %v99 = vcvt.s32.f32 %v94
    %v100 = vcvt.s32.f32 %v95
    %v101 = vcvt.s32.f32 %v96
    %v102 = vcvt.s32.f32 %v97
    %v103 = vpack.c.bf16 %v99, %v98
    %v104 = vpack.c.bf16 %v101, %v100
    %v105 = vpack.c.bf16 %v102, %v102
    %v106 = vld [vmem:[#allocation2] sm:$0xff]
    %v107 = vld [vmem:[#allocation2 + $0x8] sm:$0xff]
    %v108 = vld [vmem:[#allocation2 + $0x10] sm:$0xff]
    %v109 = vld [vmem:[#allocation2 + $0x18] sm:$0xff]
    %v110 = vld [vmem:[#allocation2 + $0x20] sm:$0xff]
    %v111 = vld [vmem:[#allocation2 + $0x28] sm:$0xff]
    %v112 = vld [vmem:[#allocation2 + $0x30] sm:$0xff]
    %v113 = vld [vmem:[#allocation2 + $0x38] sm:$0xff]
    %v114 = vld [vmem:[#allocation2 + $0x40] sm:$0xff]
    %v115 = vld [vmem:[#allocation2 + $0x48] sm:$0xff]
    %v116 = vld [vmem:[#allocation2 + $0x50] sm:$0xff]
    %v117 = vld [vmem:[#allocation2 + $0x58] sm:$0xff]
    %v118 = vld [vmem:[#allocation2 + $0x60] sm:$0xff]
    %v119 = vld [vmem:[#allocation2 + $0x68] sm:$0xff]
    %v120 = vld [vmem:[#allocation2 + $0x70] sm:$0xff]
    %v121 = vld [vmem:[#allocation2 + $0x78] sm:$0xff]
    %v138 = vunpack.c.l.b16 %v106
    %v139 = vunpack.c.h.b16 %v106
    %v140 = vunpack.c.l.b16 %v107
    %v141 = vunpack.c.h.b16 %v107
    %v142 = vunpack.c.l.b16 %v108
    %v143 = vunpack.c.h.b16 %v108
    %v144 = vunpack.c.l.b16 %v109
    %v145 = vunpack.c.h.b16 %v109
    %v146 = vunpack.c.l.b16 %v110
    %v147 = vunpack.c.h.b16 %v110
    %v148 = vunpack.c.l.b16 %v111
    %v149 = vunpack.c.h.b16 %v111
    %v150 = vunpack.c.l.b16 %v112
    %v151 = vunpack.c.h.b16 %v112
    %v152 = vunpack.c.l.b16 %v113
    %v153 = vunpack.c.h.b16 %v113
    %v154 = vunpack.c.l.b16 %v114
    %v155 = vunpack.c.h.b16 %v114
    %v156 = vunpack.c.l.b16 %v115
    %v157 = vunpack.c.h.b16 %v115
    %v158 = vunpack.c.l.b16 %v116
    %v159 = vunpack.c.h.b16 %v116
    %v160 = vunpack.c.l.b16 %v117
    %v161 = vunpack.c.h.b16 %v117
    %v162 = vunpack.c.l.b16 %v118
    %v163 = vunpack.c.h.b16 %v118
    %v164 = vunpack.c.l.b16 %v119
    %v165 = vunpack.c.h.b16 %v119
    %v166 = vunpack.c.l.b16 %v120
    %v167 = vunpack.c.h.b16 %v120
    %v168 = vunpack.c.l.b16 %v121
    %v169 = vunpack.c.h.b16 %v121
    %v170 = vpack.c.b16 %v140, %v138
    %v171 = vpack.c.b16 %v141, %v139
    %v172 = vpack.c.b16 %v144, %v142
    %v173 = vpack.c.b16 %v145, %v143
    %v174 = vpack.c.b16 %v148, %v146
    %v175 = vpack.c.b16 %v149, %v147
    %v176 = vpack.c.b16 %v152, %v150
    %v177 = vpack.c.b16 %v153, %v151
    %v178 = vpack.c.b16 %v156, %v154
    %v179 = vpack.c.b16 %v157, %v155
    %v180 = vpack.c.b16 %v160, %v158
    %v181 = vpack.c.b16 %v161, %v159
    %v182 = vpack.c.b16 %v164, %v162
    %v183 = vpack.c.b16 %v165, %v163
    %v184 = vpack.c.b16 %v168, %v166
    %v185 = vpack.c.b16 %v169, %v167
    %202 = vmatprep.subr.bf16.mxu0 %v171
    %203 = vmatpush1.bf16.msra.mxu0 %v170
    %204 = vmatprep.subr.bf16.mxu0 %v173
    %205 = vmatpush1.bf16.msra.mxu0 %v172
    %206 = vmatprep.subr.bf16.mxu0 %v175
    %207 = vmatpush1.bf16.msra.mxu0 %v174
    %208 = vmatprep.subr.bf16.mxu0 %v177
    %209 = vmatpush1.bf16.msra.mxu0 %v176
    %210 = vmatprep.subr.bf16.mxu0 %v179
    %211 = vmatpush1.bf16.msra.mxu0 %v178
    %212 = vmatprep.subr.bf16.mxu0 %v181
    %213 = vmatpush1.bf16.msra.mxu0 %v180
    %214 = vmatprep.subr.bf16.mxu0 %v183
    %215 = vmatpush1.bf16.msra.mxu0 %v182
    %216 = vmatprep.subr.bf16.mxu0 %v185
    %217 = vmatpush1.bf16.msra.mxu0 %v184
    %218 = vmatprep.subr.bf16.mxu0 0
    %219 = vmatpush1.bf16.msra.mxu0 0
    %220 = vmatprep.subr.bf16.mxu0 0
    %221 = vmatpush1.bf16.msra.mxu0 0
    %222 = vmatprep.subr.bf16.mxu0 0
    %223 = vmatpush1.bf16.msra.mxu0 0
    %224 = vmatprep.subr.bf16.mxu0 0
    %225 = vmatpush1.bf16.msra.mxu0 0
    %226 = vmatprep.subr.bf16.mxu0 0
    %227 = vmatpush1.bf16.msra.mxu0 0
    %228 = vmatprep.subr.bf16.mxu0 0
    %229 = vmatpush1.bf16.msra.mxu0 0
    %230 = vmatprep.subr.bf16.mxu0 0
    %231 = vmatpush1.bf16.msra.mxu0 0
    %232 = vmatprep.subr.bf16.mxu0 0
    %233 = vmatpush1.bf16.msra.mxu0 0
    %234 = vmatprep.mubr.bf16.mxu0 0
    %235 = vmatmul.mubr.bf16.gmra.mrb[0].mxu0 %v103
    %v236 = vpop.f32.mrb[0].mxu0
    %v237 = vadd.f32 0.0, %v236
    %v238 = vpop.f32.mrb[0].mxu0
    %v239 = vadd.f32 0.0, %v238
    %v240 = vpop.f32.mrb[0].mxu0
    %v241 = vadd.f32 0.0, %v240
    %v242 = vpop.f32.mrb[0].mxu0
    %v243 = vadd.f32 0.0, %v242
    %244 = vmatprep.mubr.bf16.mxu0 0
    %245 = vmatmul.mubr.bf16.gmra.mrb[0].mxu0 %v104
    %v246 = vpop.f32.mrb[0].mxu0
    %v247 = vadd.f32 0.0, %v246
    %v248 = vpop.f32.mrb[0].mxu0
    %v249 = vadd.f32 0.0, %v248
    %v250 = vpop.f32.mrb[0].mxu0
    %v251 = vadd.f32 0.0, %v250
    %v252 = vpop.f32.mrb[0].mxu0
    %v253 = vadd.f32 0.0, %v252
    %254 = vmatprep.mubr.bf16.mxu0 0
    %255 = vmatmul.mubr.bf16.gmra.mrb[0].mxu0 %v105
    %v256 = vpop.f32.mrb[0].mxu0
    %v257 = vadd.f32 0.0, %v256
    %v258 = vpop.f32.mrb[0].mxu0
    %v259 = vadd.f32 0.0, %v258
    %v260 = vpop.f32.mrb[0].mxu0
    %v261 = vpop.f32.mrb[0].mxu0
    %262 = vdwg.mxu0
    %v263 = vpack.c.bf16 %v241, %v237
    %v264 = vpack.c.bf16 %v243, %v239
    %v265 = vpack.c.bf16 %v251, %v247
    %v266 = vpack.c.bf16 %v253, %v249
    %v267 = vpack.c.bf16 %v257, %v257
    %v268 = vpack.c.bf16 %v259, %v259
    %v269 = vld [vmem:[#allocation5] sm:$0xff]
    %v270 = vld [vmem:[#allocation5 + $0x8] sm:$0xff]
    %v271 = vld [vmem:[#allocation5 + $0x10] sm:$0xff]
    %v272 = vld [vmem:[#allocation5 + $0x18] sm:$0xff]
    %v273 = vld [vmem:[#allocation5 + $0x20] sm:$0xff]
    %v274 = vld [vmem:[#allocation5 + $0x28] sm:$0xff]
    %v275 = vld [vmem:[#allocation5 + $0x30] sm:$0xff]
    %v276 = vld [vmem:[#allocation5 + $0x38] sm:$0xff]
    %v277 = vld [vmem:[#allocation5 + $0x40] sm:$0xff]
    %v278 = vld [vmem:[#allocation5 + $0x48] sm:$0xff]
    %v279 = vld [vmem:[#allocation5 + $0x50] sm:$0xff]
    %v280 = vld [vmem:[#allocation5 + $0x58] sm:$0xff]
    %v281 = vld [vmem:[#allocation5 + $0x60] sm:$0xff]
    %v282 = vld [vmem:[#allocation5 + $0x68] sm:$0xff]
    %v283 = vld [vmem:[#allocation5 + $0x70] sm:$0xff]
    %v284 = vld [vmem:[#allocation5 + $0x78] sm:$0xff]
    %v285 = vld [vmem:[#allocation5 + $0x80] sm:$0xff]
    %v286 = vld [vmem:[#allocation5 + $0x88] sm:$0xff]
    %v287 = vld [vmem:[#allocation5 + $0x90] sm:$0xff]
    %v288 = vld [vmem:[#allocation5 + $0x98] sm:$0xff]
    %v289 = vld [vmem:[#allocation5 + $0xa0] sm:$0xff]
    %v290 = vld [vmem:[#allocation5 + $0xa8] sm:$0xff]
    %v291 = vld [vmem:[#allocation5 + $0xb0] sm:$0xff]
    %v292 = vld [vmem:[#allocation5 + $0xb8] sm:$0xff]
    %v293 = vld [vmem:[#allocation5 + $0xc0] sm:$0xff]
    %v294 = vld [vmem:[#allocation5 + $0xc8] sm:$0xff]
    %v295 = vld [vmem:[#allocation5 + $0xd0] sm:$0xff]
    %v296 = vld [vmem:[#allocation5 + $0xd8] sm:$0xff]
    %v297 = vld [vmem:[#allocation5 + $0xe0] sm:$0xff]
    %v298 = vld [vmem:[#allocation5 + $0xe8] sm:$0xff]
    %v299 = vld [vmem:[#allocation5 + $0xf0] sm:$0xff]
    %v300 = vld [vmem:[#allocation5 + $0xf8] sm:$0xff]
    %v301 = vld [vmem:[%s3] sm:$0x3]
    %v303 = vlaneseq
    %v304 = vshrl.u32 %v303, 7
    %v305 = vsub.s32 0, %v304
    %v306 = vrot.slane %v301, %v305
    %v307 = vlaneseq
    %v308 = vshrl.u32 %v307, 7
    %v309 = vsub.s32 1, %v308
    %v310 = vrot.slane %v301, %v309
    %v345 = vunpack.c.l.b16 %v269
    %v346 = vunpack.c.h.b16 %v269
    %v347 = vunpack.c.l.b16 %v270
    %v348 = vunpack.c.h.b16 %v270
    %v349 = vunpack.c.l.b16 %v271
    %v350 = vunpack.c.h.b16 %v271
    %v351 = vunpack.c.l.b16 %v272
    %v352 = vunpack.c.h.b16 %v272
    %v353 = vunpack.c.l.b16 %v273
    %v354 = vunpack.c.h.b16 %v273
    %v355 = vunpack.c.l.b16 %v274
    %v356 = vunpack.c.h.b16 %v274
    %v357 = vunpack.c.l.b16 %v275
    %v358 = vunpack.c.h.b16 %v275
    %v359 = vunpack.c.l.b16 %v276
    %v360 = vunpack.c.h.b16 %v276
    %v361 = vunpack.c.l.b16 %v277
    %v362 = vunpack.c.h.b16 %v277
    %v363 = vunpack.c.l.b16 %v278
    %v364 = vunpack.c.h.b16 %v278
    %v365 = vunpack.c.l.b16 %v279
    %v366 = vunpack.c.h.b16 %v279
    %v367 = vunpack.c.l.b16 %v280
    %v368 = vunpack.c.h.b16 %v280
    %v369 = vunpack.c.l.b16 %v281
    %v370 = vunpack.c.h.b16 %v281
    %v371 = vunpack.c.l.b16 %v282
    %v372 = vunpack.c.h.b16 %v282
    %v373 = vunpack.c.l.b16 %v283
    %v374 = vunpack.c.h.b16 %v283
    %v375 = vunpack.c.l.b16 %v284
    %v376 = vunpack.c.h.b16 %v284
    %v377 = vunpack.c.l.b16 %v285
    %v378 = vunpack.c.h.b16 %v285
    %v379 = vunpack.c.l.b16 %v286
    %v380 = vunpack.c.h.b16 %v286
    %v381 = vunpack.c.l.b16 %v287
    %v382 = vunpack.c.h.b16 %v287
    %v383 = vunpack.c.l.b16 %v288
    %v384 = vunpack.c.h.b16 %v288
    %v385 = vunpack.c.l.b16 %v289
    %v386 = vunpack.c.h.b16 %v289
    %v387 = vunpack.c.l.b16 %v290
    %v388 = vunpack.c.h.b16 %v290
    %v389 = vunpack.c.l.b16 %v291
    %v390 = vunpack.c.h.b16 %v291
    %v391 = vunpack.c.l.b16 %v292
    %v392 = vunpack.c.h.b16 %v292
    %v393 = vunpack.c.l.b16 %v293
    %v394 = vunpack.c.h.b16 %v293
    %v395 = vunpack.c.l.b16 %v294
    %v396 = vunpack.c.h.b16 %v294
    %v397 = vunpack.c.l.b16 %v295
    %v398 = vunpack.c.h.b16 %v295
    %v399 = vunpack.c.l.b16 %v296
    %v400 = vunpack.c.h.b16 %v296
    %v401 = vunpack.c.l.b16 %v297
    %v402 = vunpack.c.h.b16 %v297
    %v403 = vunpack.c.l.b16 %v298
    %v404 = vunpack.c.h.b16 %v298
    %v405 = vunpack.c.l.b16 %v299
    %v406 = vunpack.c.h.b16 %v299
    %v407 = vunpack.c.l.b16 %v300
    %v408 = vunpack.c.h.b16 %v300
    %v409 = vpack.c.b16 %v347, %v345
    %v410 = vpack.c.b16 %v348, %v346
    %v411 = vpack.c.b16 %v351, %v349
    %v412 = vpack.c.b16 %v352, %v350
    %v413 = vpack.c.b16 %v355, %v353
    %v414 = vpack.c.b16 %v356, %v354
    %v415 = vpack.c.b16 %v359, %v357
    %v416 = vpack.c.b16 %v360, %v358
    %v417 = vpack.c.b16 %v363, %v361
    %v418 = vpack.c.b16 %v364, %v362
    %v419 = vpack.c.b16 %v367, %v365
    %v420 = vpack.c.b16 %v368, %v366
    %v421 = vpack.c.b16 %v371, %v369
    %v422 = vpack.c.b16 %v372, %v370
    %v423 = vpack.c.b16 %v375, %v373
    %v424 = vpack.c.b16 %v376, %v374
    %v425 = vpack.c.b16 %v379, %v377
    %v426 = vpack.c.b16 %v380, %v378
    %v427 = vpack.c.b16 %v383, %v381
    %v428 = vpack.c.b16 %v384, %v382
    %v429 = vpack.c.b16 %v387, %v385
    %v430 = vpack.c.b16 %v388, %v386
    %v431 = vpack.c.b16 %v391, %v389
    %v432 = vpack.c.b16 %v392, %v390
    %v433 = vpack.c.b16 %v395, %v393
    %v434 = vpack.c.b16 %v396, %v394
    %v435 = vpack.c.b16 %v399, %v397
    %v436 = vpack.c.b16 %v400, %v398
    %v437 = vpack.c.b16 %v403, %v401
    %v438 = vpack.c.b16 %v404, %v402
    %v439 = vpack.c.b16 %v407, %v405
    %v440 = vpack.c.b16 %v408, %v406
    %473 = vmatprep.subr.bf16.mxu0 %v410
    %474 = vmatpush1.bf16.msra.mxu0 %v409
    %475 = vmatprep.subr.bf16.mxu0 %v412
    %476 = vmatpush1.bf16.msra.mxu0 %v411
    %477 = vmatprep.subr.bf16.mxu0 %v414
    %478 = vmatpush1.bf16.msra.mxu0 %v413
    %479 = vmatprep.subr.bf16.mxu0 %v416
    %480 = vmatpush1.bf16.msra.mxu0 %v415
    %481 = vmatprep.subr.bf16.mxu0 %v418
    %482 = vmatpush1.bf16.msra.mxu0 %v417
    %483 = vmatprep.subr.bf16.mxu0 %v420
    %484 = vmatpush1.bf16.msra.mxu0 %v419
    %485 = vmatprep.subr.bf16.mxu0 %v422
    %486 = vmatpush1.bf16.msra.mxu0 %v421
    %487 = vmatprep.subr.bf16.mxu0 %v424
    %488 = vmatpush1.bf16.msra.mxu0 %v423
    %489 = vmatprep.subr.bf16.mxu0 %v426
    %490 = vmatpush1.bf16.msra.mxu0 %v425
    %491 = vmatprep.subr.bf16.mxu0 %v428
    %492 = vmatpush1.bf16.msra.mxu0 %v427
    %493 = vmatprep.subr.bf16.mxu0 %v430
    %494 = vmatpush1.bf16.msra.mxu0 %v429
    %495 = vmatprep.subr.bf16.mxu0 %v432
    %496 = vmatpush1.bf16.msra.mxu0 %v431
    %497 = vmatprep.subr.bf16.mxu0 %v434
    %498 = vmatpush1.bf16.msra.mxu0 %v433
    %499 = vmatprep.subr.bf16.mxu0 %v436
    %500 = vmatpush1.bf16.msra.mxu0 %v435
    %501 = vmatprep.subr.bf16.mxu0 %v438
    %502 = vmatpush1.bf16.msra.mxu0 %v437
    %503 = vmatprep.subr.bf16.mxu0 %v440
    %504 = vmatpush1.bf16.msra.mxu0 %v439
    %505 = vmatprep.mubr.bf16.mxu0 %v264
    %506 = vmatmul.mubr.bf16.gmra.mrb[0].mxu0 %v263
    %v507 = vpop.f32.mrb[0].mxu0
    %v508 = vadd.f32 %v306, %v507
    %v509 = vpop.f32.mrb[0].mxu0
    %v510 = vadd.f32 %v310, %v509
    %v511 = vpop.f32.mrb[0].mxu0
    %v512 = vadd.f32 %v306, %v511
    %v513 = vpop.f32.mrb[0].mxu0
    %v514 = vadd.f32 %v310, %v513
    %515 = vmatprep.mubr.bf16.mxu0 %v266
    %516 = vmatmul.mubr.bf16.gmra.mrb[0].mxu0 %v265
    %v517 = vpop.f32.mrb[0].mxu0
    %v518 = vadd.f32 %v306, %v517
    %v519 = vpop.f32.mrb[0].mxu0
    %v520 = vadd.f32 %v310, %v519
    %v521 = vpop.f32.mrb[0].mxu0
    %v522 = vadd.f32 %v306, %v521
    %v523 = vpop.f32.mrb[0].mxu0
    %v524 = vadd.f32 %v310, %v523
    %525 = vmatprep.mubr.bf16.mxu0 %v268
    %526 = vmatmul.mubr.bf16.gmra.mrb[0].mxu0 %v267
    %v527 = vpop.f32.mrb[0].mxu0
    %v528 = vadd.f32 %v306, %v527
    %v529 = vpop.f32.mrb[0].mxu0
    %v530 = vadd.f32 %v310, %v529
    %v531 = vpop.f32.mrb[0].mxu0
    %v532 = vpop.f32.mrb[0].mxu0
    %533 = vdwg.mxu0
    %v534 = vmax.f32 %v508, 0.0
    %v535 = vmax.f32 %v510, 0.0
    %v536 = vmax.f32 %v512, 0.0
    %v537 = vmax.f32 %v514, 0.0
    %v538 = vmax.f32 %v518, 0.0
    %v539 = vmax.f32 %v520, 0.0
    %v540 = vmax.f32 %v522, 0.0
    %v541 = vmax.f32 %v524, 0.0
    %v542 = vmax.f32 %v528, 0.0
    %v543 = vmax.f32 %v530, 0.0
    %v544 = vpack.c.bf16 %v536, %v534
    %v545 = vpack.c.bf16 %v537, %v535
    %v546 = vpack.c.bf16 %v540, %v538
    %v547 = vpack.c.bf16 %v541, %v539
    %v548 = vpack.c.bf16 %v542, %v542
    %v549 = vpack.c.bf16 %v543, %v543
    %v550 = vld [vmem:[#allocation7] sm:$0xff]
    %v551 = vld [vmem:[#allocation7 + $0x8] sm:$0xff]
    %v552 = vld [vmem:[#allocation7 + $0x10] sm:$0xff]
    %v553 = vld [vmem:[#allocation7 + $0x18] sm:$0xff]
    %v554 = vld [vmem:[#allocation7 + $0x20] sm:$0xff]
    %v555 = vld [vmem:[#allocation7 + $0x28] sm:$0xff]
    %v556 = vld [vmem:[#allocation7 + $0x30] sm:$0xff]
    %v557 = vld [vmem:[#allocation7 + $0x38] sm:$0xff]
    %v558 = vld [vmem:[#allocation7 + $0x40] sm:$0xff]
    %v559 = vld [vmem:[#allocation7 + $0x48] sm:$0xff]
    %v560 = vld [vmem:[#allocation7 + $0x50] sm:$0xff]
    %v561 = vld [vmem:[#allocation7 + $0x58] sm:$0xff]
    %v562 = vld [vmem:[#allocation7 + $0x60] sm:$0xff]
    %v563 = vld [vmem:[#allocation7 + $0x68] sm:$0xff]
    %v564 = vld [vmem:[#allocation7 + $0x70] sm:$0xff]
    %v565 = vld [vmem:[#allocation7 + $0x78] sm:$0xff]
    %v566 = vld [vmem:[#allocation7 + $0x80] sm:$0xff]
    %v567 = vld [vmem:[#allocation7 + $0x88] sm:$0xff]
    %v568 = vld [vmem:[#allocation7 + $0x90] sm:$0xff]
    %v569 = vld [vmem:[#allocation7 + $0x98] sm:$0xff]
    %v570 = vld [vmem:[#allocation7 + $0xa0] sm:$0xff]
    %v571 = vld [vmem:[#allocation7 + $0xa8] sm:$0xff]
    %v572 = vld [vmem:[#allocation7 + $0xb0] sm:$0xff]
    %v573 = vld [vmem:[#allocation7 + $0xb8] sm:$0xff]
    %v574 = vld [vmem:[#allocation7 + $0xc0] sm:$0xff]
    %v575 = vld [vmem:[#allocation7 + $0xc8] sm:$0xff]
    %v576 = vld [vmem:[#allocation7 + $0xd0] sm:$0xff]
    %v577 = vld [vmem:[#allocation7 + $0xd8] sm:$0xff]
    %v578 = vld [vmem:[#allocation7 + $0xe0] sm:$0xff]
    %v579 = vld [vmem:[#allocation7 + $0xe8] sm:$0xff]
    %v580 = vld [vmem:[#allocation7 + $0xf0] sm:$0xff]
    %v581 = vld [vmem:[#allocation7 + $0xf8] sm:$0xff]
    %v582 = vld [vmem:[%s5] sm:$0x3]
    %v584 = vlaneseq
    %v585 = vshrl.u32 %v584, 7
    %v586 = vsub.s32 0, %v585
    %v587 = vrot.slane %v582, %v586
    %v588 = vlaneseq
    %v589 = vshrl.u32 %v588, 7
    %v590 = vsub.s32 1, %v589
    %v591 = vrot.slane %v582, %v590
    %v626 = vunpack.c.l.b16 %v550
    %v627 = vunpack.c.h.b16 %v550
    %v628 = vunpack.c.l.b16 %v551
    %v629 = vunpack.c.h.b16 %v551
    %v630 = vunpack.c.l.b16 %v552
    %v631 = vunpack.c.h.b16 %v552
    %v632 = vunpack.c.l.b16 %v553
    %v633 = vunpack.c.h.b16 %v553
    %v634 = vunpack.c.l.b16 %v554
    %v635 = vunpack.c.h.b16 %v554
    %v636 = vunpack.c.l.b16 %v555
    %v637 = vunpack.c.h.b16 %v555
    %v638 = vunpack.c.l.b16 %v556
    %v639 = vunpack.c.h.b16 %v556
    %v640 = vunpack.c.l.b16 %v557
    %v641 = vunpack.c.h.b16 %v557
    %v642 = vunpack.c.l.b16 %v558
    %v643 = vunpack.c.h.b16 %v558
    %v644 = vunpack.c.l.b16 %v559
    %v645 = vunpack.c.h.b16 %v559
    %v646 = vunpack.c.l.b16 %v560
    %v647 = vunpack.c.h.b16 %v560
    %v648 = vunpack.c.l.b16 %v561
    %v649 = vunpack.c.h.b16 %v561
    %v650 = vunpack.c.l.b16 %v562
    %v651 = vunpack.c.h.b16 %v562
    %v652 = vunpack.c.l.b16 %v563
    %v653 = vunpack.c.h.b16 %v563
    %v654 = vunpack.c.l.b16 %v564
    %v655 = vunpack.c.h.b16 %v564
    %v656 = vunpack.c.l.b16 %v565
    %v657 = vunpack.c.h.b16 %v565
    %v658 = vunpack.c.l.b16 %v566
    %v659 = vunpack.c.h.b16 %v566
    %v660 = vunpack.c.l.b16 %v567
    %v661 = vunpack.c.h.b16 %v567
    %v662 = vunpack.c.l.b16 %v568
    %v663 = vunpack.c.h.b16 %v568
    %v664 = vunpack.c.l.b16 %v569
    %v665 = vunpack.c.h.b16 %v569
    %v666 = vunpack.c.l.b16 %v570
    %v667 = vunpack.c.h.b16 %v570
    %v668 = vunpack.c.l.b16 %v571
    %v669 = vunpack.c.h.b16 %v571
    %v670 = vunpack.c.l.b16 %v572
    %v671 = vunpack.c.h.b16 %v572
    %v672 = vunpack.c.l.b16 %v573
    %v673 = vunpack.c.h.b16 %v573
    %v674 = vunpack.c.l.b16 %v574
    %v675 = vunpack.c.h.b16 %v574
    %v676 = vunpack.c.l.b16 %v575
    %v677 = vunpack.c.h.b16 %v575
    %v678 = vunpack.c.l.b16 %v576
    %v679 = vunpack.c.h.b16 %v576
    %v680 = vunpack.c.l.b16 %v577
    %v681 = vunpack.c.h.b16 %v577
    %v682 = vunpack.c.l.b16 %v578
    %v683 = vunpack.c.h.b16 %v578
    %v684 = vunpack.c.l.b16 %v579
    %v685 = vunpack.c.h.b16 %v579
    %v686 = vunpack.c.l.b16 %v580
    %v687 = vunpack.c.h.b16 %v580
    %v688 = vunpack.c.l.b16 %v581
    %v689 = vunpack.c.h.b16 %v581
    %v690 = vpack.c.b16 %v628, %v626
    %v691 = vpack.c.b16 %v629, %v627
    %v692 = vpack.c.b16 %v632, %v630
    %v693 = vpack.c.b16 %v633, %v631
    %v694 = vpack.c.b16 %v636, %v634
    %v695 = vpack.c.b16 %v637, %v635
    %v696 = vpack.c.b16 %v640, %v638
    %v697 = vpack.c.b16 %v641, %v639
    %v698 = vpack.c.b16 %v644, %v642
    %v699 = vpack.c.b16 %v645, %v643
    %v700 = vpack.c.b16 %v648, %v646
    %v701 = vpack.c.b16 %v649, %v647
    %v702 = vpack.c.b16 %v652, %v650
    %v703 = vpack.c.b16 %v653, %v651
    %v704 = vpack.c.b16 %v656, %v654
    %v705 = vpack.c.b16 %v657, %v655
    %v706 = vpack.c.b16 %v660, %v658
    %v707 = vpack.c.b16 %v661, %v659
    %v708 = vpack.c.b16 %v664, %v662
    %v709 = vpack.c.b16 %v665, %v663
    %v710 = vpack.c.b16 %v668, %v666
    %v711 = vpack.c.b16 %v669, %v667
    %v712 = vpack.c.b16 %v672, %v670
    %v713 = vpack.c.b16 %v673, %v671
    %v714 = vpack.c.b16 %v676, %v674
    %v715 = vpack.c.b16 %v677, %v675
    %v716 = vpack.c.b16 %v680, %v678
    %v717 = vpack.c.b16 %v681, %v679
    %v718 = vpack.c.b16 %v684, %v682
    %v719 = vpack.c.b16 %v685, %v683
    %v720 = vpack.c.b16 %v688, %v686
    %v721 = vpack.c.b16 %v689, %v687
    %754 = vmatprep.subr.bf16.mxu0 %v691
    %755 = vmatpush1.bf16.msra.mxu0 %v690
    %756 = vmatprep.subr.bf16.mxu0 %v693
    %757 = vmatpush1.bf16.msra.mxu0 %v692
    %758 = vmatprep.subr.bf16.mxu0 %v695
    %759 = vmatpush1.bf16.msra.mxu0 %v694
    %760 = vmatprep.subr.bf16.mxu0 %v697
    %761 = vmatpush1.bf16.msra.mxu0 %v696
    %762 = vmatprep.subr.bf16.mxu0 %v699
    %763 = vmatpush1.bf16.msra.mxu0 %v698
    %764 = vmatprep.subr.bf16.mxu0 %v701
    %765 = vmatpush1.bf16.msra.mxu0 %v700
    %766 = vmatprep.subr.bf16.mxu0 %v703
    %767 = vmatpush1.bf16.msra.mxu0 %v702
    %768 = vmatprep.subr.bf16.mxu0 %v705
    %769 = vmatpush1.bf16.msra.mxu0 %v704
    %770 = vmatprep.subr.bf16.mxu0 %v707
    %771 = vmatpush1.bf16.msra.mxu0 %v706
    %772 = vmatprep.subr.bf16.mxu0 %v709
    %773 = vmatpush1.bf16.msra.mxu0 %v708
    %774 = vmatprep.subr.bf16.mxu0 %v711
    %775 = vmatpush1.bf16.msra.mxu0 %v710
    %776 = vmatprep.subr.bf16.mxu0 %v713
    %777 = vmatpush1.bf16.msra.mxu0 %v712
    %778 = vmatprep.subr.bf16.mxu0 %v715
    %779 = vmatpush1.bf16.msra.mxu0 %v714
    %780 = vmatprep.subr.bf16.mxu0 %v717
    %781 = vmatpush1.bf16.msra.mxu0 %v716
    %782 = vmatprep.subr.bf16.mxu0 %v719
    %783 = vmatpush1.bf16.msra.mxu0 %v718
    %784 = vmatprep.subr.bf16.mxu0 %v721
    %785 = vmatpush1.bf16.msra.mxu0 %v720
    %786 = vmatprep.mubr.bf16.mxu0 %v545
    %787 = vmatmul.mubr.bf16.gmra.mrb[0].mxu0 %v544
    %v788 = vpop.f32.mrb[0].mxu0
    %v789 = vadd.f32 %v587, %v788
    %v790 = vpop.f32.mrb[0].mxu0
    %v791 = vadd.f32 %v591, %v790
    %v792 = vpop.f32.mrb[0].mxu0
    %v793 = vadd.f32 %v587, %v792
    %v794 = vpop.f32.mrb[0].mxu0
    %v795 = vadd.f32 %v591, %v794
    %796 = vmatprep.mubr.bf16.mxu0 %v547
    %797 = vmatmul.mubr.bf16.gmra.mrb[0].mxu0 %v546
    %v798 = vpop.f32.mrb[0].mxu0
    %v799 = vadd.f32 %v587, %v798
    %v800 = vpop.f32.mrb[0].mxu0
    %v801 = vadd.f32 %v591, %v800
    %v802 = vpop.f32.mrb[0].mxu0
    %v803 = vadd.f32 %v587, %v802
    %v804 = vpop.f32.mrb[0].mxu0
    %v805 = vadd.f32 %v591, %v804
    %806 = vmatprep.mubr.bf16.mxu0 %v549
    %807 = vmatmul.mubr.bf16.gmra.mrb[0].mxu0 %v548
    %v808 = vpop.f32.mrb[0].mxu0
    %v809 = vadd.f32 %v587, %v808
    %v810 = vpop.f32.mrb[0].mxu0
    %v811 = vadd.f32 %v591, %v810
    %v812 = vpop.f32.mrb[0].mxu0
    %v813 = vpop.f32.mrb[0].mxu0
    %814 = vdwg.mxu0
    %815 = vst [vmem:[#allocation8] sm:$0xff] %v789
    %816 = vst [vmem:[#allocation8 + $0x8] sm:$0xff] %v791
    %817 = vst [vmem:[#allocation8 + $0x10] sm:$0xff] %v793
    %818 = vst [vmem:[#allocation8 + $0x18] sm:$0xff] %v795
    %819 = vst [vmem:[#allocation8 + $0x20] sm:$0xff] %v799
    %820 = vst [vmem:[#allocation8 + $0x28] sm:$0xff] %v801
    %821 = vst [vmem:[#allocation8 + $0x30] sm:$0xff] %v803
    %822 = vst [vmem:[#allocation8 + $0x38] sm:$0xff] %v805
    %823 = vst [vmem:[#allocation8 + $0x40] sm:$0xff] %v809
    %824 = vst [vmem:[#allocation8 + $0x48] sm:$0xff] %v811
    // Predicated region
    $region38: #{tpu_custom_call.1} parent=1 // pred_check
      _
    $region39: #{tpu_custom_call.1} parent=1 // pred_check_branch
      %826 = sbr.rel (0) target = $region41
    $region40: #{tpu_custom_call.1} parent=1 // pred_region
      %s828 = ssub.s32 1280, 1280
      %829 = vsyncadd [#allocation4], %s828
      %s830 = sshll.u32 [#allocation8], 4
      %s831 = int_to_ptr.vmem [resolvable:$true] %s830
      %836 = dma.vmem_to_hbm [thread:$0]  %s831, 1280, %s6, [#allocation4], 256, 256, 16
    $region41: #{tpu_custom_call.1} parent=1 // pred_fallthru
      _
    // Predicated region
    $region42: #{tpu_custom_call.1} parent=1 // pred_check
      _
    $region43: #{tpu_custom_call.1} parent=1 // pred_check_branch
      %838 = sbr.rel (0) target = $region45
    $region44: #{tpu_custom_call.1} parent=1 // pred_region
      %839 = dma.done [#allocation4], 1280
    $region45: #{tpu_custom_call.1} parent=1 // pred_fallthru
      _
    %840 = vsyncpa [#allocation3], 1
    %841 = vsyncpa [#allocation6], 1
    %842 = vsyncpa [#allocation4], 1

</llo_original>
